<compile_context>
chip_gen: v7x
topology: tpu7x:2x2x1
jax: 0.10.0
libtpu: 0.0.40
codegen_flags: <defaults>
</compile_context>

<pallas_src>
import functools

import jax
import jax.numpy as jnp
from jax.experimental import pallas as pl
from jax.experimental.pallas import tpu as pltpu


def _block_diag(w, p):
    """Replicate a weight p times along a block diagonal.

    (din, dout) -> (p*din, p*dout)  or  (L, din, dout) -> (L, p*din, p*dout).
    Tiny one-time wrapper cost (128x128 f32 = 64 KiB per layer).
    """
    eye = jnp.eye(p, dtype=w.dtype)
    if w.ndim == 2:
        din, dout = w.shape
        return jnp.einsum("pq,io->piqo", eye, w).reshape(p * din, p * dout)
    l, din, dout = w.shape
    return jnp.einsum("pq,lio->lpiqo", eye, w).reshape(l, p * din, p * dout)


def _mlp_kernel(x_ref, wh_ref, bh_ref, wo_ref, bo_ref, o_ref, *, depth, alpha):
    """Fused lane-packed MLP forward for one batch tile.

    x_ref : (TBp, P*D)            packed activations (P logical rows per row)
    wh_ref: (depth-1, P*D, P*D)   block-diagonal hidden weights (VMEM-resident)
    bh_ref: (depth-1, 1, P*D)     tiled hidden biases (f32)
    wo_ref: (P*D, P*OUT)          block-diagonal output weight
    bo_ref: (1, P*OUT)            tiled output bias (f32)
    o_ref : (TBp, P*OUT)          packed f32 output tile (no lane padding)
    """
    store_dtype = x_ref.dtype                      # f32 or bf16 storage dtype
    h = x_ref[...]
    # Static Python loop — depth is a compile-time constant.
    for i in range(depth - 1):
        z = jnp.dot(h, wh_ref[i], preferred_element_type=jnp.float32)
        z = z + bh_ref[i]                          # f32 bias broadcast
        if 0.0 <= alpha <= 1.0:
            z = jnp.maximum(z, alpha * z)          # LeakyReLU: one vmax
        else:
            z = jnp.where(z >= 0, z, alpha * z)
        h = z.astype(store_dtype)
    out = jnp.dot(h, wo_ref[...], preferred_element_type=jnp.float32)
    o_ref[...] = (out + bo_ref[...]).astype(o_ref.dtype)


def mlp_forward(x, w_hidden, b_hidden, w_out, b_out, *, alpha,
                block_b=4096, pack=4, param_dtype=None, min_grid_steps=8):
    """Fused Pallas MLP forward.

    x        : (B, D)            activations
    w_hidden : (depth-1, D, D)   (in, out) layout  (== PyTorch W.T)
    b_hidden : (depth-1, 1, D)
    w_out    : (D, OUT)          (in, out) layout
    b_out    : (1, OUT)
    block_b  : logical rows per grid step (sweep parameter)
    pack     : lane-packing factor P (4 keeps all generations memory-bound)
    param_dtype: optional storage dtype (e.g. jnp.bfloat16) for x / weights;
                 biases, accumulation and elementwise math stay in f32.
    """
    B, D = x.shape
    depth_m1 = w_hidden.shape[0]
    depth = depth_m1 + 1
    assert depth_m1 >= 1
    OUT = w_out.shape[1]
    P = pack

    if param_dtype is not None:
        # Ideally the caller hands x over already in param_dtype so this cast
        # fuses upstream instead of being an extra HBM pass.
        x = x.astype(param_dtype)
        w_hidden = w_hidden.astype(param_dtype)
        w_out = w_out.astype(param_dtype)
    # Biases stay f32 so the f32 bias-add keeps full precision on all paths.
    b_hidden = b_hidden.astype(jnp.float32)
    b_out = b_out.astype(jnp.float32)

    # ---- lane packing: P logical rows per packed row --------------------------
    rem = B % P
    if rem:
        # Only when B isn't a multiple of P (pads <= P-1 rows; this copies x —
        # avoided entirely on the common aligned path).
        x = jnp.pad(x, ((0, P - rem), (0, 0)))
    Bp = x.shape[0] // P
    xp = x.reshape(Bp, P * D)                          # free row-major identity

    wh = _block_diag(w_hidden, P)                      # (depth-1, P*D, P*D)
    bh = jnp.tile(b_hidden, (1, 1, P))                 # (depth-1, 1, P*D)
    wo = _block_diag(w_out, P)                         # (P*D, P*OUT)
    bo = jnp.tile(b_out, (1, P))                       # (1, P*OUT)

    # ---- batch tiling ----------------------------------------------------------
    # VMEM is nowhere near a constraint (tiles are well under 1 MiB double-
    # buffered), so use big tiles; but keep >= ~min_grid_steps grid steps so the
    # "parallel" batch axis load-balances across v7x's two TensorCores.
    TBp = max(8, (block_b // P // 8) * 8)              # packed rows per step
    if TBp >= Bp:
        TBp = Bp                                       # single full-extent block
    if Bp >= min_grid_steps * 8 and Bp // TBp < min_grid_steps:
        per_step = -(-Bp // min_grid_steps)
        TBp = max(8, (per_step // 8) * 8)
    grid = (pl.cdiv(Bp, TBp),)                         # ragged last block: Pallas
                                                       # clips tail writes, no pad

    kernel = functools.partial(_mlp_kernel, depth=depth, alpha=alpha)

    out_packed = pl.pallas_call(
        kernel,
        out_shape=jax.ShapeDtypeStruct((Bp, P * OUT), jnp.float32),
        grid_spec=pl.GridSpec(
            grid=grid,
            in_specs=[
                pl.BlockSpec((TBp, P * D), lambda i: (i, 0)),
                # constant index maps -> weights/biases DMA'd once, VMEM-resident
                pl.BlockSpec((depth_m1, P * D, P * D), lambda i: (0, 0, 0)),
                pl.BlockSpec((depth_m1, 1, P * D), lambda i: (0, 0, 0)),
                pl.BlockSpec((P * D, P * OUT), lambda i: (0, 0)),
                pl.BlockSpec((1, P * OUT), lambda i: (0, 0)),
            ],
            out_specs=pl.BlockSpec((TBp, P * OUT), lambda i: (i, 0)),
        ),
        compiler_params=pltpu.CompilerParams(
            dimension_semantics=("parallel",)),
    )(xp, wh, bh, wo, bo)

    # (Bp, P*OUT) row-major == (Bp*P, OUT): free identity reshape; no padded
    # lanes and no wrapper slice on the common (B % P == 0) path.
    out = out_packed.reshape(Bp * P, OUT)
    if rem:
        out = out[:B]
    return out


def mlp_reference(x, w_hidden, b_hidden, w_out, b_out, *, alpha):
    """Pure-JAX f32 reference mirroring the PyTorch forward (eval mode)."""
    h = x
    for i in range(w_hidden.shape[0]):
        h = h @ w_hidden[i] + b_hidden[i]
        h = jnp.where(h >= 0, h, alpha * h)
    return h @ w_out + b_out


if __name__ == "__main__":
    dim = 32       # net_dim
    out_dim = 8    # net_outdim
    depth = 3      # net_depth
    alpha = 0.1    # net_alpha (LeakyReLU negative slope)

    key = jax.random.PRNGKey(0)
    k_x, k_wh, k_bh, k_wo, k_bo = jax.random.split(key, 5)

    # Deterministic parameter init (synthetic; shapes match nn.Linear(dim,dim)
    # and nn.Linear(dim,out_dim)), stored pre-transposed to (in, out).
    scale = 1.0 / jnp.sqrt(jnp.float32(dim))
    w_hidden = jax.random.normal(k_wh, (depth - 1, dim, dim), jnp.float32) * scale
    b_hidden = jax.random.normal(k_bh, (depth - 1, 1, dim), jnp.float32) * scale
    w_out = jax.random.normal(k_wo, (dim, out_dim), jnp.float32) * scale
    b_out = jax.random.normal(k_bo, (1, out_dim), jnp.float32) * scale

    # --- small-batch f32 check (single full-extent tile, module-exact numerics) ---
    batch = 64
    x = jax.random.normal(k_x, (batch, dim), dtype=jnp.float32)
    out = jax.block_until_ready(
        mlp_forward(x, w_hidden, b_hidden, w_out, b_out, alpha=alpha))
    ref = mlp_reference(x, w_hidden, b_hidden, w_out, b_out, alpha=alpha)
    assert out.shape == (batch, out_dim), out.shape
    assert jnp.allclose(out, ref, atol=1e-5, rtol=1e-5), \
        f"max abs err = {jnp.max(jnp.abs(out - ref))}"

    # --- multi-step ragged grid: B/P is not a tile multiple (boundary clipping) ---
    batch2 = 1000
    x2 = jax.random.normal(k_x, (batch2, dim), dtype=jnp.float32)
    out2 = jax.block_until_ready(
        mlp_forward(x2, w_hidden, b_hidden, w_out, b_out, alpha=alpha, block_b=256))
    ref2 = mlp_reference(x2, w_hidden, b_hidden, w_out, b_out, alpha=alpha)
    assert out2.shape == (batch2, out_dim), out2.shape
    assert jnp.allclose(out2, ref2, atol=1e-5, rtol=1e-5), \
        f"max abs err = {jnp.max(jnp.abs(out2 - ref2))}"

    # --- B not a multiple of the pack factor + bf16-storage path (f32 accumulate) ---
    batch3 = 1003
    x3 = jax.random.normal(k_x, (batch3, dim), dtype=jnp.float32)
    out3 = jax.block_until_ready(
        mlp_forward(x3, w_hidden, b_hidden, w_out, b_out, alpha=alpha,
                    param_dtype=jnp.bfloat16))
    ref3 = mlp_reference(x3, w_hidden, b_hidden, w_out, b_out, alpha=alpha)
    assert out3.shape == (batch3, out_dim), out3.shape
    assert jnp.allclose(out3, ref3, atol=5e-2, rtol=5e-2), \
        f"max abs err (bf16) = {jnp.max(jnp.abs(out3 - ref3))}"

    print("KERNEL_OK")
</pallas_src>

<mosaic_0001>
module attributes {stable_mosaic.version = 11 : i64} {
  func.func @_mlp_kernel(%arg0: i32, %arg1: memref<16x128xf32, #tpu.memory_space<vmem>>, %arg2: memref<2x128x128xf32, #tpu.memory_space<vmem>>, %arg3: memref<2x1x128xf32, #tpu.memory_space<vmem>>, %arg4: memref<128x32xf32, #tpu.memory_space<vmem>>, %arg5: memref<1x32xf32, #tpu.memory_space<vmem>>, %arg6: memref<16x32xf32, #tpu.memory_space<vmem>>) attributes {dimension_semantics = [#tpu.dimension_semantics<parallel>], iteration_bounds = array<i64: 1>, scalar_prefetch = 0 : i64, scratch_operands = 0 : i64, tpu.core_type = #tpu.core_type<tc>, window_params = [{transform_indices = @transform_0, window_bounds = array<i64: 16, 128>}, {pipeline_mode = #tpu.pipeline_mode<synchronous>, transform_indices = @transform_1, window_bounds = array<i64: 2, 128, 128>}, {pipeline_mode = #tpu.pipeline_mode<synchronous>, transform_indices = @transform_2, window_bounds = array<i64: 2, 1, 128>}, {pipeline_mode = #tpu.pipeline_mode<synchronous>, transform_indices = @transform_3, window_bounds = array<i64: 128, 32>}, {pipeline_mode = #tpu.pipeline_mode<synchronous>, transform_indices = @transform_4, window_bounds = array<i64: 1, 32>}, {transform_indices = @transform_5, window_bounds = array<i64: 16, 32>}]} {
    %c0 = arith.constant 0 : index
    %c0_0 = arith.constant 0 : index
    %0 = vector.load %arg1[%c0, %c0_0] : memref<16x128xf32, #tpu.memory_space<vmem>>, vector<16x128xf32>
    %c0_1 = arith.constant 0 : index
    %c0_2 = arith.constant 0 : index
    %c0_3 = arith.constant 0 : index
    %1 = vector.load %arg2[%c0_1, %c0_2, %c0_3] : memref<2x128x128xf32, #tpu.memory_space<vmem>>, vector<1x128x128xf32>
    %2 = vector.shape_cast %1 : vector<1x128x128xf32> to vector<128x128xf32>
    %cst = arith.constant dense<0.000000e+00> : vector<16x128xf32>
    %3 = tpu.matmul %0, %2, %cst {dimension_numbers = #tpu.dot_dimension_numbers<[1], [0], [0], [1], [0, 0, 1, 1], [], []>} : vector<16x128xf32>, vector<128x128xf32>, vector<16x128xf32> -> vector<16x128xf32>
    %c0_4 = arith.constant 0 : index
    %c0_5 = arith.constant 0 : index
    %c0_6 = arith.constant 0 : index
    %4 = vector.load %arg3[%c0_4, %c0_5, %c0_6] : memref<2x1x128xf32, #tpu.memory_space<vmem>>, vector<1x1x128xf32>
    %5 = vector.shape_cast %4 : vector<1x1x128xf32> to vector<1x128xf32>
    %6 = vector.broadcast %5 : vector<1x128xf32> to vector<16x128xf32>
    %7 = arith.addf %3, %6 : vector<16x128xf32>
    %cst_7 = arith.constant 1.000000e-01 : f32
    %8 = vector.broadcast %cst_7 : f32 to vector<16x128xf32>
    %9 = arith.mulf %8, %7 : vector<16x128xf32>
    %10 = arith.maximumf %7, %9 : vector<16x128xf32>
    %c1 = arith.constant 1 : index
    %c0_8 = arith.constant 0 : index
    %c0_9 = arith.constant 0 : index
    %11 = vector.load %arg2[%c1, %c0_8, %c0_9] : memref<2x128x128xf32, #tpu.memory_space<vmem>>, vector<1x128x128xf32>
    %12 = vector.shape_cast %11 : vector<1x128x128xf32> to vector<128x128xf32>
    %cst_10 = arith.constant dense<0.000000e+00> : vector<16x128xf32>
    %13 = tpu.matmul %10, %12, %cst_10 {dimension_numbers = #tpu.dot_dimension_numbers<[1], [0], [0], [1], [0, 0, 1, 1], [], []>} : vector<16x128xf32>, vector<128x128xf32>, vector<16x128xf32> -> vector<16x128xf32>
    %c1_11 = arith.constant 1 : index
    %c0_12 = arith.constant 0 : index
    %c0_13 = arith.constant 0 : index
    %14 = vector.load %arg3[%c1_11, %c0_12, %c0_13] : memref<2x1x128xf32, #tpu.memory_space<vmem>>, vector<1x1x128xf32>
    %15 = vector.shape_cast %14 : vector<1x1x128xf32> to vector<1x128xf32>
    %16 = vector.broadcast %15 : vector<1x128xf32> to vector<16x128xf32>
    %17 = arith.addf %13, %16 : vector<16x128xf32>
    %cst_14 = arith.constant 1.000000e-01 : f32
    %18 = vector.broadcast %cst_14 : f32 to vector<16x128xf32>
    %19 = arith.mulf %18, %17 : vector<16x128xf32>
    %20 = arith.maximumf %17, %19 : vector<16x128xf32>
    %c0_15 = arith.constant 0 : index
    %c0_16 = arith.constant 0 : index
    %21 = vector.load %arg4[%c0_15, %c0_16] : memref<128x32xf32, #tpu.memory_space<vmem>>, vector<128x32xf32>
    %cst_17 = arith.constant dense<0.000000e+00> : vector<16x32xf32>
    %22 = tpu.matmul %20, %21, %cst_17 {dimension_numbers = #tpu.dot_dimension_numbers<[1], [0], [0], [1], [0, 0, 1, 1], [], []>} : vector<16x128xf32>, vector<128x32xf32>, vector<16x32xf32> -> vector<16x32xf32>
    %c0_18 = arith.constant 0 : index
    %c0_19 = arith.constant 0 : index
    %23 = vector.load %arg5[%c0_18, %c0_19] : memref<1x32xf32, #tpu.memory_space<vmem>>, vector<1x32xf32>
    %24 = vector.broadcast %23 : vector<1x32xf32> to vector<16x32xf32>
    %25 = arith.addf %22, %24 : vector<16x32xf32>
    %c0_20 = arith.constant 0 : index
    %c0_21 = arith.constant 0 : index
    %26 = vector.load %arg6[%c0_20, %c0_21] : memref<16x32xf32, #tpu.memory_space<vmem>>, vector<16x32xf32>
    tpu.vector_store %arg6[%c0_20, %c0_21], %25 {strides = array<i32>} : memref<16x32xf32, #tpu.memory_space<vmem>>, vector<16x32xf32>,
    return
  }
  func.func @transform_0(%arg0: i32) -> (i32, i32) {
    %c0_i32 = arith.constant 0 : i32
    %c0_i32_0 = arith.constant 0 : i32
    return %arg0, %c0_i32 : i32, i32
  }
  func.func @transform_1(%arg0: i32) -> (i32, i32, i32) {
    %c0_i32 = arith.constant 0 : i32
    %c0_i32_0 = arith.constant 0 : i32
    %c0_i32_1 = arith.constant 0 : i32
    %c0_i32_2 = arith.constant 0 : i32
    return %c0_i32, %c0_i32_0, %c0_i32_1 : i32, i32, i32
  }
  func.func @transform_2(%arg0: i32) -> (i32, i32, i32) {
    %c0_i32 = arith.constant 0 : i32
    %c0_i32_0 = arith.constant 0 : i32
    %c0_i32_1 = arith.constant 0 : i32
    %c0_i32_2 = arith.constant 0 : i32
    return %c0_i32, %c0_i32_0, %c0_i32_1 : i32, i32, i32
  }
  func.func @transform_3(%arg0: i32) -> (i32, i32) {
    %c0_i32 = arith.constant 0 : i32
    %c0_i32_0 = arith.constant 0 : i32
    %c0_i32_1 = arith.constant 0 : i32
    return %c0_i32, %c0_i32_0 : i32, i32
  }
  func.func @transform_4(%arg0: i32) -> (i32, i32) {
    %c0_i32 = arith.constant 0 : i32
    %c0_i32_0 = arith.constant 0 : i32
    %c0_i32_1 = arith.constant 0 : i32
    return %c0_i32, %c0_i32_0 : i32, i32
  }
  func.func @transform_5(%arg0: i32) -> (i32, i32) {
    %c0_i32 = arith.constant 0 : i32
    %c0_i32_0 = arith.constant 0 : i32
    return %arg0, %c0_i32 : i32, i32
  }
}

</mosaic_0001>

<llo_original>
// kernel: tpu_custom_call.1
$region0: #{tpu_custom_call.1}
  #allocation0 [shape = 'u32[]', space=smem, size = 0x4, offset = 0x4, fixed_abs, tag = 'smem constant byte address 0x4 - core index']
  #allocation1 [shape = 'u32[144,128]{1,0:T(1,128)}', space=vmem, size = 0x12000, scoped, tag = 'internal scratch']
  %s0 = inlined_call_operand.vmem [shape: f32[16,128], index: 0, kind: input, shape index: {}]
  %s1 = inlined_call_operand.hbm [shape: f32[2,128,128], index: 1, kind: input, shape index: {}]
  %s2 = inlined_call_operand.vmem [shape: f32[2,1,128], index: 2, kind: input, shape index: {}]
  %s3 = inlined_call_operand.vmem [shape: f32[128,32], index: 3, kind: input, shape index: {}]
  %s4 = inlined_call_operand.vmem [shape: f32[1,32], index: 4, kind: input, shape index: {}]
  %s5 = inlined_call_operand.hbm [shape: f32[16,32], index: 5, kind: output, shape index: {}]
  %s6 = sld [smem:[#allocation0]]
  $region34: #{tpu_custom_call.1} parent=0
    _
  %s8 = ssub.s32 1, %s6
  %s9 = scalar_select 0, %s8, %s6
  $region1: #{tpu_custom_call.1} parent=0
    #allocation2 [shape = 'u8[131072]{0}', space=vmem, size = 0x20000, scoped, tag = 'input window, operand 1, single buffered']
    #allocation3 [shape = 's32[1]{0}', space=sflag, size = 0x4, scoped, tag = 'scoped memory for tpu_custom_call.1']
    #allocation4 [shape = 's32[1]{0}', space=sflag, size = 0x4, scoped, tag = 'scoped memory for tpu_custom_call.1']
    #allocation5 [shape = 'u8[8192]{0}', space=vmem, size = 0x2000, scoped, tag = 'output window, operand 0, single buffered']
    %10 = vsyncpa [#allocation3], 0
    %11 = vsyncpa [#allocation4], 0
    // Predicated region
    $region2: #{tpu_custom_call.1} parent=1 // pred_check
      _
    $region3: #{tpu_custom_call.1} parent=1 // pred_check_branch
      %13 = sbr.rel (0) target = $region5
    $region4: #{tpu_custom_call.1} parent=1 // pred_region
      _
    $region5: #{tpu_custom_call.1} parent=1 // pred_fallthru
      _
    // Predicated region
    $region6: #{tpu_custom_call.1} parent=1 // pred_check
      _
    $region7: #{tpu_custom_call.1} parent=1 // pred_check_branch
      %15 = sbr.rel (0) target = $region9
    $region8: #{tpu_custom_call.1} parent=1 // pred_region
      %s17 = ssub.s32 4096, 4096
      %18 = vsyncadd [#allocation3], %s17
      %s19 = sshll.u32 [#allocation2], 4
      %s20 = int_to_ptr.vmem [resolvable:$true] %s19
      %25 = dma.hbm_to_vmem [thread:$0]  %s1, 4096, %s20, [#allocation3], 128, 128, 8
    $region9: #{tpu_custom_call.1} parent=1 // pred_fallthru
      _
    // Predicated region
    $region10: #{tpu_custom_call.1} parent=1 // pred_check
      _
    $region11: #{tpu_custom_call.1} parent=1 // pred_check_branch
      %27 = sbr.rel (0) target = $region13
    $region12: #{tpu_custom_call.1} parent=1 // pred_region
      _
    $region13: #{tpu_custom_call.1} parent=1 // pred_fallthru
      _
    // Predicated region
    $region14: #{tpu_custom_call.1} parent=1 // pred_check
      _
    $region15: #{tpu_custom_call.1} parent=1 // pred_check_branch
      %29 = sbr.rel (0) target = $region17
    $region16: #{tpu_custom_call.1} parent=1 // pred_region
      _
    $region17: #{tpu_custom_call.1} parent=1 // pred_fallthru
      _
    // Predicated region
    $region18: #{tpu_custom_call.1} parent=1 // pred_check
      _
    $region19: #{tpu_custom_call.1} parent=1 // pred_check_branch
      %31 = sbr.rel (0) target = $region21
    $region20: #{tpu_custom_call.1} parent=1 // pred_region
      _
    $region21: #{tpu_custom_call.1} parent=1 // pred_fallthru
      _
    // Predicated region
    $region22: #{tpu_custom_call.1} parent=1 // pred_check
      _
    $region23: #{tpu_custom_call.1} parent=1 // pred_check_branch
      %33 = sbr.rel (0) target = $region25
    $region24: #{tpu_custom_call.1} parent=1 // pred_region
      %34 = dma.done [#allocation3], 4096
    $region25: #{tpu_custom_call.1} parent=1 // pred_fallthru
      _
    %v35 = vld [vmem:[%s0] sm:$0xff]
    %v36 = vld [vmem:[%s0 + $0x8] sm:$0xff]
    %v37 = vld [vmem:[#allocation2] sm:$0xff]
    %v38 = vld [vmem:[#allocation2 + $0x8] sm:$0xff]
    %v39 = vld [vmem:[#allocation2 + $0x10] sm:$0xff]
    %v40 = vld [vmem:[#allocation2 + $0x18] sm:$0xff]
    %v41 = vld [vmem:[#allocation2 + $0x20] sm:$0xff]
    %v42 = vld [vmem:[#allocation2 + $0x28] sm:$0xff]
    %v43 = vld [vmem:[#allocation2 + $0x30] sm:$0xff]
    %v44 = vld [vmem:[#allocation2 + $0x38] sm:$0xff]
    %v45 = vld [vmem:[#allocation2 + $0x40] sm:$0xff]
    %v46 = vld [vmem:[#allocation2 + $0x48] sm:$0xff]
    %v47 = vld [vmem:[#allocation2 + $0x50] sm:$0xff]
    %v48 = vld [vmem:[#allocation2 + $0x58] sm:$0xff]
    %v49 = vld [vmem:[#allocation2 + $0x60] sm:$0xff]
    %v50 = vld [vmem:[#allocation2 + $0x68] sm:$0xff]
    %v51 = vld [vmem:[#allocation2 + $0x70] sm:$0xff]
    %v52 = vld [vmem:[#allocation2 + $0x78] sm:$0xff]
    %v53 = vld [vmem:[%s2] sm:$0x1]
    %v55 = vlaneseq
    %v56 = vshrl.u32 %v55, 7
    %v57 = vsub.s32 0, %v56
    %v58 = vrot.slane %v53, %v57
    %60 = vmatprep.subr.mxu0 0.0
    %61 = vmatpush1.msra.mxu0 %v37
    %62 = vmatprep.subr.mxu0 0.0
    %63 = vmatpush1.msra.mxu0 %v38
    %64 = vmatprep.subr.mxu0 0.0
    %65 = vmatpush1.msra.mxu0 %v39
    %66 = vmatprep.subr.mxu0 0.0
    %67 = vmatpush1.msra.mxu0 %v40
    %68 = vmatprep.subr.mxu0 0.0
    %69 = vmatpush1.msra.mxu0 %v41
    %70 = vmatprep.subr.mxu0 0.0
    %71 = vmatpush1.msra.mxu0 %v42
    %72 = vmatprep.subr.mxu0 0.0
    %73 = vmatpush1.msra.mxu0 %v43
    %74 = vmatprep.subr.mxu0 0.0
    %75 = vmatpush1.msra.mxu0 %v44
    %76 = vmatprep.subr.mxu0 0.0
    %77 = vmatpush1.msra.mxu0 %v45
    %78 = vmatprep.subr.mxu0 0.0
    %79 = vmatpush1.msra.mxu0 %v46
    %80 = vmatprep.subr.mxu0 0.0
    %81 = vmatpush1.msra.mxu0 %v47
    %82 = vmatprep.subr.mxu0 0.0
    %83 = vmatpush1.msra.mxu0 %v48
    %84 = vmatprep.subr.mxu0 0.0
    %85 = vmatpush1.msra.mxu0 %v49
    %86 = vmatprep.subr.mxu0 0.0
    %87 = vmatpush1.msra.mxu0 %v50
    %88 = vmatprep.subr.mxu0 0.0
    %89 = vmatpush1.msra.mxu0 %v51
    %90 = vmatprep.subr.mxu0 0.0
    %91 = vmatpush1.msra.mxu0 %v52
    %92 = vmatprep.subr.mxu0 0.0
    %93 = vmatpush1.msra.mxu0 0.0
    %94 = vmatprep.subr.mxu0 0.0
    %95 = vmatpush1.msra.mxu0 0.0
    %96 = vmatprep.subr.mxu0 0.0
    %97 = vmatpush1.msra.mxu0 0.0
    %98 = vmatprep.subr.mxu0 0.0
    %99 = vmatpush1.msra.mxu0 0.0
    %100 = vmatprep.subr.mxu0 0.0
    %101 = vmatpush1.msra.mxu0 0.0
    %102 = vmatprep.subr.mxu0 0.0
    %103 = vmatpush1.msra.mxu0 0.0
    %104 = vmatprep.subr.mxu0 0.0
    %105 = vmatpush1.msra.mxu0 0.0
    %106 = vmatprep.subr.mxu0 0.0
    %107 = vmatpush1.msra.mxu0 0.0
    %108 = vmatprep.subr.mxu0 0.0
    %109 = vmatpush1.msra.mxu0 0.0
    %110 = vmatprep.subr.mxu0 0.0
    %111 = vmatpush1.msra.mxu0 0.0
    %112 = vmatprep.subr.mxu0 0.0
    %113 = vmatpush1.msra.mxu0 0.0
    %114 = vmatprep.subr.mxu0 0.0
    %115 = vmatpush1.msra.mxu0 0.0
    %116 = vmatprep.subr.mxu0 0.0
    %117 = vmatpush1.msra.mxu0 0.0
    %118 = vmatprep.subr.mxu0 0.0
    %119 = vmatpush1.msra.mxu0 0.0
    %120 = vmatprep.subr.mxu0 0.0
    %121 = vmatpush1.msra.mxu0 0.0
    %122 = vmatprep.subr.mxu0 0.0
    %123 = vmatpush1.msra.mxu0 0.0
    %124 = vmatprep.mubr.f32.mxu0 0.0
    %125 = vmatmul.mubr.f32.gmra.mrb[0].mxu0 %v35
    %v126 = vpop.f32.mrb[0].mxu0
    %v127 = vadd.f32 %v58, %v126
    %v128 = vpop.f32.mrb[0].mxu0
    %129 = vmatprep.mubr.f32.mxu0 0.0
    %130 = vmatmul.mubr.f32.gmra.mrb[0].mxu0 %v36
    %v131 = vpop.f32.mrb[0].mxu0
    %v132 = vadd.f32 %v58, %v131
    %v133 = vpop.f32.mrb[0].mxu0
    %134 = vdwg.mxu0
    %v135 = vmul.f32 %v127, 0.1
    %v136 = vmul.f32 %v132, 0.1
    %v137 = vmax.f32 %v127, %v135
    %v138 = vmax.f32 %v132, %v136
    %s139 = scalar_lea.vmem [#allocation2], 128
    %v140 = vld [vmem:[%s139] sm:$0xff]
    %v141 = vld [vmem:[%s139 + $0x8] sm:$0xff]
    %v142 = vld [vmem:[%s139 + $0x10] sm:$0xff]
    %v143 = vld [vmem:[%s139 + $0x18] sm:$0xff]
    %v144 = vld [vmem:[%s139 + $0x20] sm:$0xff]
    %v145 = vld [vmem:[%s139 + $0x28] sm:$0xff]
    %v146 = vld [vmem:[%s139 + $0x30] sm:$0xff]
    %v147 = vld [vmem:[%s139 + $0x38] sm:$0xff]
    %v148 = vld [vmem:[%s139 + $0x40] sm:$0xff]
    %v149 = vld [vmem:[%s139 + $0x48] sm:$0xff]
    %v150 = vld [vmem:[%s139 + $0x50] sm:$0xff]
    %v151 = vld [vmem:[%s139 + $0x58] sm:$0xff]
    %v152 = vld [vmem:[%s139 + $0x60] sm:$0xff]
    %v153 = vld [vmem:[%s139 + $0x68] sm:$0xff]
    %v154 = vld [vmem:[%s139 + $0x70] sm:$0xff]
    %v155 = vld [vmem:[%s139 + $0x78] sm:$0xff]
    %s156 = scalar_lea.vmem %s2, 1
    %v157 = vld [vmem:[%s156] sm:$0x1]
    %v159 = vlaneseq
    %v160 = vshrl.u32 %v159, 7
    %v161 = vsub.s32 0, %v160
    %v162 = vrot.slane %v157, %v161
    %164 = vmatprep.subr.mxu0 0.0
    %165 = vmatpush1.msra.mxu0 %v140
    %166 = vmatprep.subr.mxu0 0.0
    %167 = vmatpush1.msra.mxu0 %v141
    %168 = vmatprep.subr.mxu0 0.0
    %169 = vmatpush1.msra.mxu0 %v142
    %170 = vmatprep.subr.mxu0 0.0
    %171 = vmatpush1.msra.mxu0 %v143
    %172 = vmatprep.subr.mxu0 0.0
    %173 = vmatpush1.msra.mxu0 %v144
    %174 = vmatprep.subr.mxu0 0.0
    %175 = vmatpush1.msra.mxu0 %v145
    %176 = vmatprep.subr.mxu0 0.0
    %177 = vmatpush1.msra.mxu0 %v146
    %178 = vmatprep.subr.mxu0 0.0
    %179 = vmatpush1.msra.mxu0 %v147
    %180 = vmatprep.subr.mxu0 0.0
    %181 = vmatpush1.msra.mxu0 %v148
    %182 = vmatprep.subr.mxu0 0.0
    %183 = vmatpush1.msra.mxu0 %v149
    %184 = vmatprep.subr.mxu0 0.0
    %185 = vmatpush1.msra.mxu0 %v150
    %186 = vmatprep.subr.mxu0 0.0
    %187 = vmatpush1.msra.mxu0 %v151
    %188 = vmatprep.subr.mxu0 0.0
    %189 = vmatpush1.msra.mxu0 %v152
    %190 = vmatprep.subr.mxu0 0.0
    %191 = vmatpush1.msra.mxu0 %v153
    %192 = vmatprep.subr.mxu0 0.0
    %193 = vmatpush1.msra.mxu0 %v154
    %194 = vmatprep.subr.mxu0 0.0
    %195 = vmatpush1.msra.mxu0 %v155
    %196 = vmatprep.subr.mxu0 0.0
    %197 = vmatpush1.msra.mxu0 0.0
    %198 = vmatprep.subr.mxu0 0.0
    %199 = vmatpush1.msra.mxu0 0.0
    %200 = vmatprep.subr.mxu0 0.0
    %201 = vmatpush1.msra.mxu0 0.0
    %202 = vmatprep.subr.mxu0 0.0
    %203 = vmatpush1.msra.mxu0 0.0
    %204 = vmatprep.subr.mxu0 0.0
    %205 = vmatpush1.msra.mxu0 0.0
    %206 = vmatprep.subr.mxu0 0.0
    %207 = vmatpush1.msra.mxu0 0.0
    %208 = vmatprep.subr.mxu0 0.0
    %209 = vmatpush1.msra.mxu0 0.0
    %210 = vmatprep.subr.mxu0 0.0
    %211 = vmatpush1.msra.mxu0 0.0
    %212 = vmatprep.subr.mxu0 0.0
    %213 = vmatpush1.msra.mxu0 0.0
    %214 = vmatprep.subr.mxu0 0.0
    %215 = vmatpush1.msra.mxu0 0.0
    %216 = vmatprep.subr.mxu0 0.0
    %217 = vmatpush1.msra.mxu0 0.0
    %218 = vmatprep.subr.mxu0 0.0
    %219 = vmatpush1.msra.mxu0 0.0
    %220 = vmatprep.subr.mxu0 0.0
    %221 = vmatpush1.msra.mxu0 0.0
    %222 = vmatprep.subr.mxu0 0.0
    %223 = vmatpush1.msra.mxu0 0.0
    %224 = vmatprep.subr.mxu0 0.0
    %225 = vmatpush1.msra.mxu0 0.0
    %226 = vmatprep.subr.mxu0 0.0
    %227 = vmatpush1.msra.mxu0 0.0
    %228 = vmatprep.mubr.f32.mxu0 0.0
    %229 = vmatmul.mubr.f32.gmra.mrb[0].mxu0 %v137
    %v230 = vpop.f32.mrb[0].mxu0
    %v231 = vadd.f32 %v162, %v230
    %v232 = vpop.f32.mrb[0].mxu0
    %233 = vmatprep.mubr.f32.mxu0 0.0
    %234 = vmatmul.mubr.f32.gmra.mrb[0].mxu0 %v138
    %v235 = vpop.f32.mrb[0].mxu0
    %v236 = vadd.f32 %v162, %v235
    %v237 = vpop.f32.mrb[0].mxu0
    %238 = vdwg.mxu0
    %v239 = vmul.f32 %v231, 0.1
    %v240 = vmul.f32 %v236, 0.1
    %v241 = vmax.f32 %v231, %v239
    %v242 = vmax.f32 %v236, %v240
    %v243 = vld [vmem:[%s3] sm:$0xff]
    %v244 = vld [vmem:[%s3 + $0x8] sm:$0xff]
    %v245 = vld [vmem:[%s3 + $0x10] sm:$0xff]
    %v246 = vld [vmem:[%s3 + $0x18] sm:$0xff]
    %v247 = vld [vmem:[%s3 + $0x20] sm:$0xff]
    %v248 = vld [vmem:[%s3 + $0x28] sm:$0xff]
    %v249 = vld [vmem:[%s3 + $0x30] sm:$0xff]
    %v250 = vld [vmem:[%s3 + $0x38] sm:$0xff]
    %v251 = vld [vmem:[%s3 + $0x40] sm:$0xff]
    %v252 = vld [vmem:[%s3 + $0x48] sm:$0xff]
    %v253 = vld [vmem:[%s3 + $0x50] sm:$0xff]
    %v254 = vld [vmem:[%s3 + $0x58] sm:$0xff]
    %v255 = vld [vmem:[%s3 + $0x60] sm:$0xff]
    %v256 = vld [vmem:[%s3 + $0x68] sm:$0xff]
    %v257 = vld [vmem:[%s3 + $0x70] sm:$0xff]
    %v258 = vld [vmem:[%s3 + $0x78] sm:$0xff]
    %v259 = vld [vmem:[%s4] sm:$0x1]
    %v261 = vlaneseq
    %v262 = vshrl.u32 %v261, 7
    %v263 = vsub.s32 0, %v262
    %v264 = vrot.slane %v259, %v263
    %266 = vmatprep.subr.mxu0 0.0
    %267 = vmatpush1.msra.mxu0 %v243
    %268 = vmatprep.subr.mxu0 0.0
    %269 = vmatpush1.msra.mxu0 %v244
    %270 = vmatprep.subr.mxu0 0.0
    %271 = vmatpush1.msra.mxu0 %v245
    %272 = vmatprep.subr.mxu0 0.0
    %273 = vmatpush1.msra.mxu0 %v246
    %274 = vmatprep.subr.mxu0 0.0
    %275 = vmatpush1.msra.mxu0 %v247
    %276 = vmatprep.subr.mxu0 0.0
    %277 = vmatpush1.msra.mxu0 %v248
    %278 = vmatprep.subr.mxu0 0.0
    %279 = vmatpush1.msra.mxu0 %v249
    %280 = vmatprep.subr.mxu0 0.0
    %281 = vmatpush1.msra.mxu0 %v250
    %282 = vmatprep.subr.mxu0 0.0
    %283 = vmatpush1.msra.mxu0 %v251
    %284 = vmatprep.subr.mxu0 0.0
    %285 = vmatpush1.msra.mxu0 %v252
    %286 = vmatprep.subr.mxu0 0.0
    %287 = vmatpush1.msra.mxu0 %v253
    %288 = vmatprep.subr.mxu0 0.0
    %289 = vmatpush1.msra.mxu0 %v254
    %290 = vmatprep.subr.mxu0 0.0
    %291 = vmatpush1.msra.mxu0 %v255
    %292 = vmatprep.subr.mxu0 0.0
    %293 = vmatpush1.msra.mxu0 %v256
    %294 = vmatprep.subr.mxu0 0.0
    %295 = vmatpush1.msra.mxu0 %v257
    %296 = vmatprep.subr.mxu0 0.0
    %297 = vmatpush1.msra.mxu0 %v258
    %298 = vmatprep.subr.mxu0 0.0
    %299 = vmatpush1.msra.mxu0 0.0
    %300 = vmatprep.subr.mxu0 0.0
    %301 = vmatpush1.msra.mxu0 0.0
    %302 = vmatprep.subr.mxu0 0.0
    %303 = vmatpush1.msra.mxu0 0.0
    %304 = vmatprep.subr.mxu0 0.0
    %305 = vmatpush1.msra.mxu0 0.0
    %306 = vmatprep.subr.mxu0 0.0
    %307 = vmatpush1.msra.mxu0 0.0
    %308 = vmatprep.subr.mxu0 0.0
    %309 = vmatpush1.msra.mxu0 0.0
    %310 = vmatprep.subr.mxu0 0.0
    %311 = vmatpush1.msra.mxu0 0.0
    %312 = vmatprep.subr.mxu0 0.0
    %313 = vmatpush1.msra.mxu0 0.0
    %314 = vmatprep.subr.mxu0 0.0
    %315 = vmatpush1.msra.mxu0 0.0
    %316 = vmatprep.subr.mxu0 0.0
    %317 = vmatpush1.msra.mxu0 0.0
    %318 = vmatprep.subr.mxu0 0.0
    %319 = vmatpush1.msra.mxu0 0.0
    %320 = vmatprep.subr.mxu0 0.0
    %321 = vmatpush1.msra.mxu0 0.0
    %322 = vmatprep.subr.mxu0 0.0
    %323 = vmatpush1.msra.mxu0 0.0
    %324 = vmatprep.subr.mxu0 0.0
    %325 = vmatpush1.msra.mxu0 0.0
    %326 = vmatprep.subr.mxu0 0.0
    %327 = vmatpush1.msra.mxu0 0.0
    %328 = vmatprep.subr.mxu0 0.0
    %329 = vmatpush1.msra.mxu0 0.0
    %330 = vmatprep.mubr.f32.mxu0 0.0
    %331 = vmatmul.mubr.f32.gmra.mrb[0].mxu0 %v241
    %v332 = vpop.f32.mrb[0].mxu0
    %v333 = vadd.f32 %v264, %v332
    %v334 = vpop.f32.mrb[0].mxu0
    %335 = vmatprep.mubr.f32.mxu0 0.0
    %336 = vmatmul.mubr.f32.gmra.mrb[0].mxu0 %v242
    %v337 = vpop.f32.mrb[0].mxu0
    %v338 = vadd.f32 %v264, %v337
    %v339 = vpop.f32.mrb[0].mxu0
    %340 = vdwg.mxu0
    %vm341 = vcmask 261120
    %342 = vst.msk [vmem:[#allocation5] sm:$0xff] %vm341, %v333
    %343 = vst.msk [vmem:[#allocation5 + $0x8] sm:$0xff] %vm341, %v338
    // Predicated region
    $region26: #{tpu_custom_call.1} parent=1 // pred_check
      _
    $region27: #{tpu_custom_call.1} parent=1 // pred_check_branch
      %345 = sbr.rel (0) target = $region29
    $region28: #{tpu_custom_call.1} parent=1 // pred_region
      %s347 = ssub.s32 256, 256
      %348 = vsyncadd [#allocation4], %s347
      %s349 = sshll.u32 [#allocation5], 4
      %s350 = int_to_ptr.vmem [resolvable:$true] %s349
      %355 = dma.vmem_to_hbm [thread:$0]  %s350, 256, %s5, [#allocation4], 128, 128, 8
    $region29: #{tpu_custom_call.1} parent=1 // pred_fallthru
      _
    // Predicated region
    $region30: #{tpu_custom_call.1} parent=1 // pred_check
      _
    $region31: #{tpu_custom_call.1} parent=1 // pred_check_branch
      %357 = sbr.rel (0) target = $region33
    $region32: #{tpu_custom_call.1} parent=1 // pred_region
      %358 = dma.done [#allocation4], 256
    $region33: #{tpu_custom_call.1} parent=1 // pred_fallthru
      _
    %359 = vsyncpa [#allocation3], 1
    %360 = vsyncpa [#allocation4], 1

</llo_original>
